<compile_context>
chip_gen: v7x
topology: tpu7x:2x2x1
jax: 0.10.0
libtpu: 0.0.40
codegen_flags: <defaults>
</compile_context>

<pallas_src>
import functools
import math

import jax
import jax.numpy as jnp
from jax.experimental import pallas as pl
from jax.experimental.pallas import tpu as pltpu

# Re-anchor the double-angle recurrence with an exact sin/cos every this many
# octaves to bound accumulated error (~4x error growth per doubling).
_ANCHOR_EVERY = 4


def _posenc_kernel(x_ref, o_ref, *, num_freq, dim_in):
    # x_ref: (dim_in, TILE_N)          normalized coordinates, channels-first
    # o_ref: (2*F*dim_in, TILE_N)      [sin | cos] encoding, channels-first
    x = x_ref[...].astype(jnp.float32)
    half = num_freq * dim_in
    s = c = None
    for f in range(num_freq):                       # static unroll over octaves
        if f % _ANCHOR_EVERY == 0:
            arg = (math.pi * float(2 ** f)) * x     # coef baked in at compile time
            s = jnp.sin(arg)                        # EUP
            c = jnp.cos(arg)                        # EUP
        else:
            # double angle on the VPU: sin(2a) = 2 s c, cos(2a) = (c-s)(c+s)
            s, c = 2.0 * s * c, (c - s) * (c + s)
        o_ref[pl.ds(f * dim_in, dim_in), :] = s.astype(o_ref.dtype)
        o_ref[pl.ds(half + f * dim_in, dim_in), :] = c.astype(o_ref.dtype)


def sinusoidal_positional_encoding(coords, dim_out, *, flatten=True, pad=False,
                                   cat=False, tile_n=512,
                                   out_dtype=jnp.float32):
    """JAX/Pallas equivalent of SinusoidalPositionalEncoding.forward."""
    dim_in = coords.shape[-1]
    if cat:
        assert flatten
    c_out = dim_out - dim_in if cat else dim_out
    if not pad:
        assert c_out % (dim_in * 2) == 0
    num_freq = c_out // (dim_in * 2)
    assert num_freq >= 1, "need at least one frequency"

    lead = coords.shape[:-1]
    x2d = coords.reshape(-1, dim_in).astype(jnp.float32)
    n = x2d.shape[0]
    x_t = x2d.T                                     # (dim_in, N); input is small
    enc_dim = 2 * num_freq * dim_in

    # Lane-dense tiling along N. For small N use one full-extent block (no padding,
    # block dim == array dim). Otherwise a multiple-of-128 tile; the ragged last
    # block is handled by Pallas (OOB reads are safe, OOB writes are dropped).
    if n <= tile_n:
        tile = n
    else:
        tile = max((tile_n // 128) * 128, 128)
    grid_n = pl.cdiv(n, tile)

    kernel = functools.partial(_posenc_kernel, num_freq=num_freq, dim_in=dim_in)

    out_t = pl.pallas_call(
        kernel,
        out_shape=jax.ShapeDtypeStruct((enc_dim, n), out_dtype),
        grid_spec=pltpu.PrefetchScalarGridSpec(
            num_scalar_prefetch=0,
            grid=(grid_n,),
            in_specs=[pl.BlockSpec((dim_in, tile), lambda i: (0, i))],
            out_specs=pl.BlockSpec((enc_dim, tile), lambda i: (0, i)),
        ),
        compiler_params=pltpu.CompilerParams(
            dimension_semantics=("parallel",)),     # shards N across TCs on v7x
    )(x_t)

    # Transpose back to the PyTorch channels-last contract. Consumers that can take
    # the channels-first (enc_dim, N) slab should use out_t directly and skip this
    # extra HBM pass over the (large) output.
    out = out_t.T                                   # (N, enc_dim)

    # Glue flags, applied in the same order as the PyTorch module
    # (flatten -> cat -> pad).
    if flatten:
        out = out.reshape(lead + (enc_dim,))
    else:
        out = out.reshape(lead + (2 * num_freq, dim_in))
    if cat:
        out = jnp.concatenate([out, coords.astype(out.dtype)], axis=-1)
    if pad:
        widths = [(0, 0)] * (out.ndim - 1) + [(0, dim_out - out.shape[-1])]
        out = jnp.pad(out, widths)
    return out


def _reference(coords, dim_out):
    """Pure-JAX transcription of the PyTorch forward (flatten=True, no cat/pad)."""
    dim_in = coords.shape[-1]
    num_freq = dim_out // (2 * dim_in)
    coefs = jnp.pi * (2.0 ** jnp.arange(num_freq, dtype=jnp.float32))
    octaves = coords[..., None, :] * coefs[:, None]          # (..., F, D)
    out = jnp.concatenate([jnp.sin(octaves), jnp.cos(octaves)], axis=-2)
    return out.reshape(coords.shape[:-1] + (-1,))


if __name__ == "__main__":
    key = jax.random.PRNGKey(0)
    batch, num_points, dim_in, dim_out = 2, 16, 4, 32
    # coords normalized in (-1, +1)
    coords = jax.random.uniform(
        key, (batch, num_points, dim_in), dtype=jnp.float32,
        minval=-1.0, maxval=1.0)

    out = sinusoidal_positional_encoding(coords, dim_out)
    out = jax.block_until_ready(out)

    ref = _reference(coords, dim_out)
    assert out.shape == (batch, num_points, dim_out), out.shape
    # double-angle recurrence accumulates ~1e-6-level error at high octaves,
    # so use a slightly looser tolerance than exact sin/cos.
    assert jnp.allclose(out, ref, atol=1e-4, rtol=1e-4), \
        float(jnp.max(jnp.abs(out - ref)))

    # non-flattened path sanity check (same kernel, different wrapper reshape)
    out_nf = jax.block_until_ready(
        sinusoidal_positional_encoding(coords, dim_out, flatten=False))
    assert out_nf.shape == (batch, num_points, 2 * (dim_out // (2 * dim_in)), dim_in)

    print("KERNEL_OK")
</pallas_src>

<mosaic_0001>
module attributes {stable_mosaic.version = 11 : i64} {
  func.func @_posenc_kernel(%arg0: i32, %arg1: memref<4x32xf32, #tpu.memory_space<vmem>>, %arg2: memref<32x32xf32, #tpu.memory_space<vmem>>) attributes {dimension_semantics = [#tpu.dimension_semantics<parallel>], iteration_bounds = array<i64: 1>, scalar_prefetch = 0 : i64, scratch_operands = 0 : i64, tpu.core_type = #tpu.core_type<tc>, window_params = [{transform_indices = @transform_0, window_bounds = array<i64: 4, 32>}, {transform_indices = @transform_1, window_bounds = array<i64: 32, 32>}]} {
    %c0 = arith.constant 0 : index
    %c0_0 = arith.constant 0 : index
    %0 = vector.load %arg1[%c0, %c0_0] : memref<4x32xf32, #tpu.memory_space<vmem>>, vector<4x32xf32>
    %cst = arith.constant 3.14159274 : f32
    %1 = vector.broadcast %cst : f32 to vector<4x32xf32>
    %2 = arith.mulf %1, %0 : vector<4x32xf32>
    %3 = math.sin %2 : vector<4x32xf32>
    %4 = math.cos %2 : vector<4x32xf32>
    %c0_1 = arith.constant 0 : index
    %c0_2 = arith.constant 0 : index
    %5 = vector.load %arg2[%c0_1, %c0_2] : memref<32x32xf32, #tpu.memory_space<vmem>>, vector<4x32xf32>
    tpu.vector_store %arg2[%c0_1, %c0_2], %3 {strides = array<i32>} : memref<32x32xf32, #tpu.memory_space<vmem>>, vector<4x32xf32>,
    %c16 = arith.constant 16 : index
    %c0_3 = arith.constant 0 : index
    %6 = vector.load %arg2[%c16, %c0_3] : memref<32x32xf32, #tpu.memory_space<vmem>>, vector<4x32xf32>
    tpu.vector_store %arg2[%c16, %c0_3], %4 {strides = array<i32>} : memref<32x32xf32, #tpu.memory_space<vmem>>, vector<4x32xf32>,
    %cst_4 = arith.constant 2.000000e+00 : f32
    %7 = vector.broadcast %cst_4 : f32 to vector<4x32xf32>
    %8 = arith.mulf %7, %3 : vector<4x32xf32>
    %9 = arith.mulf %8, %4 : vector<4x32xf32>
    %10 = arith.subf %4, %3 : vector<4x32xf32>
    %11 = arith.addf %4, %3 : vector<4x32xf32>
    %12 = arith.mulf %10, %11 : vector<4x32xf32>
    %c4 = arith.constant 4 : index
    %c0_5 = arith.constant 0 : index
    %13 = vector.load %arg2[%c4, %c0_5] : memref<32x32xf32, #tpu.memory_space<vmem>>, vector<4x32xf32>
    tpu.vector_store %arg2[%c4, %c0_5], %9 {strides = array<i32>} : memref<32x32xf32, #tpu.memory_space<vmem>>, vector<4x32xf32>,
    %c20 = arith.constant 20 : index
    %c0_6 = arith.constant 0 : index
    %14 = vector.load %arg2[%c20, %c0_6] : memref<32x32xf32, #tpu.memory_space<vmem>>, vector<4x32xf32>
    tpu.vector_store %arg2[%c20, %c0_6], %12 {strides = array<i32>} : memref<32x32xf32, #tpu.memory_space<vmem>>, vector<4x32xf32>,
    %cst_7 = arith.constant 2.000000e+00 : f32
    %15 = vector.broadcast %cst_7 : f32 to vector<4x32xf32>
    %16 = arith.mulf %15, %9 : vector<4x32xf32>
    %17 = arith.mulf %16, %12 : vector<4x32xf32>
    %18 = arith.subf %12, %9 : vector<4x32xf32>
    %19 = arith.addf %12, %9 : vector<4x32xf32>
    %20 = arith.mulf %18, %19 : vector<4x32xf32>
    %c8 = arith.constant 8 : index
    %c0_8 = arith.constant 0 : index
    %21 = vector.load %arg2[%c8, %c0_8] : memref<32x32xf32, #tpu.memory_space<vmem>>, vector<4x32xf32>
    tpu.vector_store %arg2[%c8, %c0_8], %17 {strides = array<i32>} : memref<32x32xf32, #tpu.memory_space<vmem>>, vector<4x32xf32>,
    %c24 = arith.constant 24 : index
    %c0_9 = arith.constant 0 : index
    %22 = vector.load %arg2[%c24, %c0_9] : memref<32x32xf32, #tpu.memory_space<vmem>>, vector<4x32xf32>
    tpu.vector_store %arg2[%c24, %c0_9], %20 {strides = array<i32>} : memref<32x32xf32, #tpu.memory_space<vmem>>, vector<4x32xf32>,
    %cst_10 = arith.constant 2.000000e+00 : f32
    %23 = vector.broadcast %cst_10 : f32 to vector<4x32xf32>
    %24 = arith.mulf %23, %17 : vector<4x32xf32>
    %25 = arith.mulf %24, %20 : vector<4x32xf32>
    %26 = arith.subf %20, %17 : vector<4x32xf32>
    %27 = arith.addf %20, %17 : vector<4x32xf32>
    %28 = arith.mulf %26, %27 : vector<4x32xf32>
    %c12 = arith.constant 12 : index
    %c0_11 = arith.constant 0 : index
    %29 = vector.load %arg2[%c12, %c0_11] : memref<32x32xf32, #tpu.memory_space<vmem>>, vector<4x32xf32>
    tpu.vector_store %arg2[%c12, %c0_11], %25 {strides = array<i32>} : memref<32x32xf32, #tpu.memory_space<vmem>>, vector<4x32xf32>,
    %c28 = arith.constant 28 : index
    %c0_12 = arith.constant 0 : index
    %30 = vector.load %arg2[%c28, %c0_12] : memref<32x32xf32, #tpu.memory_space<vmem>>, vector<4x32xf32>
    tpu.vector_store %arg2[%c28, %c0_12], %28 {strides = array<i32>} : memref<32x32xf32, #tpu.memory_space<vmem>>, vector<4x32xf32>,
    return
  }
  func.func @transform_0(%arg0: i32) -> (i32, i32) {
    %c0_i32 = arith.constant 0 : i32
    %c0_i32_0 = arith.constant 0 : i32
    return %c0_i32, %arg0 : i32, i32
  }
  func.func @transform_1(%arg0: i32) -> (i32, i32) {
    %c0_i32 = arith.constant 0 : i32
    %c0_i32_0 = arith.constant 0 : i32
    return %c0_i32, %arg0 : i32, i32
  }
}

</mosaic_0001>

<llo_original>
// kernel: tpu_custom_call.1
$region0: #{tpu_custom_call.1}
  #allocation0 [shape = 'u32[]', space=smem, size = 0x4, offset = 0x4, fixed_abs, tag = 'smem constant byte address 0x4 - core index']
  #allocation1 [shape = 'u32[144,128]{1,0:T(1,128)}', space=vmem, size = 0x12000, scoped, tag = 'internal scratch']
  %s0 = inlined_call_operand.hbm [shape: f32[4,32], index: 0, kind: input, shape index: {}]
  %s1 = inlined_call_operand.hbm [shape: f32[32,32], index: 1, kind: output, shape index: {}]
  %s2 = sld [smem:[#allocation0]]
  $region18: #{tpu_custom_call.1} parent=0
    _
  %s4 = ssub.s32 1, %s2
  %s5 = scalar_select 0, %s4, %s2
  $region1: #{tpu_custom_call.1} parent=0
    #allocation2 [shape = 'u8[2048]{0}', space=vmem, size = 0x800, scoped, tag = 'input window, operand 0, single buffered']
    #allocation3 [shape = 's32[1]{0}', space=sflag, size = 0x4, scoped, tag = 'scoped memory for tpu_custom_call.1']
    #allocation4 [shape = 's32[1]{0}', space=sflag, size = 0x4, scoped, tag = 'scoped memory for tpu_custom_call.1']
    #allocation5 [shape = 'u8[16384]{0}', space=vmem, size = 0x4000, scoped, tag = 'output window, operand 0, single buffered']
    %6 = vsyncpa [#allocation3], 0
    %7 = vsyncpa [#allocation4], 0
    // Predicated region
    $region2: #{tpu_custom_call.1} parent=1 // pred_check
      _
    $region3: #{tpu_custom_call.1} parent=1 // pred_check_branch
      %9 = sbr.rel (0) target = $region5
    $region4: #{tpu_custom_call.1} parent=1 // pred_region
      %s11 = ssub.s32 64, 64
      %12 = vsyncadd [#allocation3], %s11
      %s14 = sshll.u32 [#allocation2], 4
      %s15 = int_to_ptr.vmem [resolvable:$true] %s14
      %17 = dma.hbm_to_vmem [thread:$0]  %s0, 64, %s15, [#allocation3]
    $region5: #{tpu_custom_call.1} parent=1 // pred_fallthru
      _
    // Predicated region
    $region6: #{tpu_custom_call.1} parent=1 // pred_check
      _
    $region7: #{tpu_custom_call.1} parent=1 // pred_check_branch
      %19 = sbr.rel (0) target = $region9
    $region8: #{tpu_custom_call.1} parent=1 // pred_region
      %20 = dma.done [#allocation3], 64
    $region9: #{tpu_custom_call.1} parent=1 // pred_fallthru
      _
    %v21 = vld [vmem:[#allocation2] sm:$0xf]
    %v22 = vmul.f32 %v21, 3.1415927
    %v23 = vand.u32 2147483647, %v22
    %vm24 = vcmp.le.f32.partialorder %v23, 0.7853982
    %vm25 = vcmp.lt.s32.totalorder %v22, 0
    %v26 = vand.u32 %v22, 2139095040
    %v27 = vshrl.u32 %v26, 23
    %v28 = vsub.s32 %v27, 127
    %v29 = vand.u32 2147483647, %v22
    %v30 = vand.u32 %v29, 8388607
    %v31 = vor.u32 %v30, 8388608
    %v32 = vsub.s32 0, %v31
    %v33 = vadd.s32 %v28, 1
    %vm34 = vcmp.gt.s32.totalorder %v33, 0
    %v35 = vsel %vm34, %v33, 0
    %v36 = vshrl.u32 %v35, 5
    %v37 = vand.u32 %v35, 31
    %v38 = vsub.s32 32, %v37
    %v39 = vshrl.u32 683565275, %v38
    %v40 = vshll.u32 683565275, %v37
    %v41 = vshrl.u32 2475754826, %v38
    %v42 = vor.u32 %v40, %v41
    %v43 = vshll.u32 2475754826, %v37
    %v44 = vshrl.u32 2131351028, %v38
    %v45 = vor.u32 %v43, %v44
    %v46 = vshll.u32 2131351028, %v37
    %v47 = vshrl.u32 2102212464, %v38
    %v48 = vor.u32 %v46, %v47
    %v49 = vshll.u32 2102212464, %v37
    %v50 = vshrl.u32 920167782, %v38
    %v51 = vor.u32 %v49, %v50
    %v52 = vshll.u32 920167782, %v37
    %v53 = vshrl.u32 1326507024, %v38
    %v54 = vor.u32 %v52, %v53
    %vm55 = vcmp.lt.s32.totalorder %v36, 1
    %vm56 = vcmp.lt.s32.totalorder %v36, 2
    %vm57 = vcmp.lt.s32.totalorder %v36, 3
    %vm58 = vcmp.lt.s32.totalorder %v36, 4
    %v59 = vsel %vm55, %v39, %v42
    %v60 = vsel %vm58, %v48, 2102212464
    %v61 = vsel %vm57, %v45, %v60
    %v62 = vsel %vm56, %v59, %v61
    %v63 = vsel %vm55, %v42, %v45
    %v64 = vsel %vm58, %v51, 920167782
    %v65 = vsel %vm57, %v48, %v64
    %v66 = vsel %vm56, %v63, %v65
    %v67 = vsel %vm55, %v45, %v48
    %v68 = vsel %vm58, %v54, 1326507024
    %v69 = vsel %vm57, %v51, %v68
    %v70 = vsel %vm56, %v67, %v69
    %v71 = vshll.u32 %v31, 8
    %v72 = vmul.u32.u64.compose %v71, %v70
    %v73 = vextract.low.u32 %v72
    %v74 = vextract.high.u32 %v72
    %v75 = vmul.u32.u64.compose %v71, %v66
    %v76 = vextract.low.u32 %v75
    %v77 = vextract.high.u32 %v75
    %v78 = vmul.u32 %v71, %v62
    %v79 = vadd.s32 %v74, %v76
    %vm80 = vc.u32 %v74, %v76
    %v81 = vadd.s32 %v77, 1
    %v82 = vsel %vm80, %v81, %v77
    %v83 = vadd.s32 %v78, %v82
    %v84 = vadd.s32 %v83, 536870912
    %v85 = vshrl.u32 %v84, 30
    %v86 = vshll.u32 %v85, 30
    %v87 = vsub.s32 %v83, %v86
    %vm88 = vcmp.lt.s32.totalorder %v87, 0
    %v89 = vsub.s32 0, %v87
    %v90 = vsel %vm88, %v89, %v87
    %v91 = vclz %v90
    %v92 = vsub.s32 %v91, 2
    %vm93 = vcmp.gt.s32.totalorder 0, %v92
    %v94 = vsel %vm93, 0, %v92
    %v95 = vsub.s32 32, %v94
    %v96 = vshll.u32 %v87, %v94
    %v97 = vshrl.u32 %v79, %v95
    %v98 = vor.u32 %v96, %v97
    %v99 = vsub.s32 4294967266, %v94
    %v100 = vadd.s32 %v99, 127
    %v101 = vshll.u32 %v100, 23
    %v102 = vor.u32 4788187, %v101
    %v103 = vand.u32 2147483647, %v102
    %v105 = vcvt.s32.f32 %v98
    %v106 = vmul.f32 %v105, %v103
    %v107 = vxor.u32 %v106, 2147483648
    %v108 = vsel %vm25, %v107, %v106
    %v109 = vsub.s32 4, %v85
    %v110 = vsel %vm25, %v109, %v85
    %v111 = vsel %vm24, %v22, %v108
    %v112 = vsel %vm24, 0, %v110
    %v113 = vcosq.f32.pop %v111
    %v114 = vsinq.f32.pop %v111
    %vm115 = vweird.f32 %v22
    %v116 = vadd.s32 %v112, 3
    %v117 = vand.u32 %v116, 3
    %vm118 = vcmp.lt.s32.totalorder %v117, 2
    %vm119 = vcmp.eq.s32.totalorder %v117, 0
    %v120 = vxor.u32 %v114, 2147483648
    %v121 = vsel %vm119, %v113, %v120
    %vm122 = vcmp.eq.s32.totalorder %v117, 2
    %v123 = vxor.u32 %v113, 2147483648
    %v124 = vsel %vm122, %v123, %v114
    %v125 = vsel %vm118, %v121, %v124
    %v126 = vsel %vm115, nan, %v125
    %v127 = vand.u32 2147483647, %v22
    %vm128 = vcmp.le.f32.partialorder %v127, 0.7853982
    %vm129 = vcmp.lt.s32.totalorder %v22, 0
    %v130 = vand.u32 %v22, 2139095040
    %v131 = vshrl.u32 %v130, 23
    %v132 = vsub.s32 %v131, 127
    %v133 = vand.u32 2147483647, %v22
    %v134 = vand.u32 %v133, 8388607
    %v135 = vor.u32 %v134, 8388608
    %v136 = vsub.s32 0, %v135
    %v137 = vadd.s32 %v132, 1
    %vm138 = vcmp.gt.s32.totalorder %v137, 0
    %v139 = vsel %vm138, %v137, 0
    %v140 = vshrl.u32 %v139, 5
    %v141 = vand.u32 %v139, 31
    %v142 = vsub.s32 32, %v141
    %v143 = vshrl.u32 683565275, %v142
    %v144 = vshll.u32 683565275, %v141
    %v145 = vshrl.u32 2475754826, %v142
    %v146 = vor.u32 %v144, %v145
    %v147 = vshll.u32 2475754826, %v141
    %v148 = vshrl.u32 2131351028, %v142
    %v149 = vor.u32 %v147, %v148
    %v150 = vshll.u32 2131351028, %v141
    %v151 = vshrl.u32 2102212464, %v142
    %v152 = vor.u32 %v150, %v151
    %v153 = vshll.u32 2102212464, %v141
    %v154 = vshrl.u32 920167782, %v142
    %v155 = vor.u32 %v153, %v154
    %v156 = vshll.u32 920167782, %v141
    %v157 = vshrl.u32 1326507024, %v142
    %v158 = vor.u32 %v156, %v157
    %vm159 = vcmp.lt.s32.totalorder %v140, 1
    %vm160 = vcmp.lt.s32.totalorder %v140, 2
    %vm161 = vcmp.lt.s32.totalorder %v140, 3
    %vm162 = vcmp.lt.s32.totalorder %v140, 4
    %v163 = vsel %vm159, %v143, %v146
    %v164 = vsel %vm162, %v152, 2102212464
    %v165 = vsel %vm161, %v149, %v164
    %v166 = vsel %vm160, %v163, %v165
    %v167 = vsel %vm159, %v146, %v149
    %v168 = vsel %vm162, %v155, 920167782
    %v169 = vsel %vm161, %v152, %v168
    %v170 = vsel %vm160, %v167, %v169
    %v171 = vsel %vm159, %v149, %v152
    %v172 = vsel %vm162, %v158, 1326507024
    %v173 = vsel %vm161, %v155, %v172
    %v174 = vsel %vm160, %v171, %v173
    %v175 = vshll.u32 %v135, 8
    %v176 = vmul.u32.u64.compose %v175, %v174
    %v177 = vextract.low.u32 %v176
    %v178 = vextract.high.u32 %v176
    %v179 = vmul.u32.u64.compose %v175, %v170
    %v180 = vextract.low.u32 %v179
    %v181 = vextract.high.u32 %v179
    %v182 = vmul.u32 %v175, %v166
    %v183 = vadd.s32 %v178, %v180
    %vm184 = vc.u32 %v178, %v180
    %v185 = vadd.s32 %v181, 1
    %v186 = vsel %vm184, %v185, %v181
    %v187 = vadd.s32 %v182, %v186
    %v188 = vadd.s32 %v187, 536870912
    %v189 = vshrl.u32 %v188, 30
    %v190 = vshll.u32 %v189, 30
    %v191 = vsub.s32 %v187, %v190
    %vm192 = vcmp.lt.s32.totalorder %v191, 0
    %v193 = vsub.s32 0, %v191
    %v194 = vsel %vm192, %v193, %v191
    %v195 = vclz %v194
    %v196 = vsub.s32 %v195, 2
    %vm197 = vcmp.gt.s32.totalorder 0, %v196
    %v198 = vsel %vm197, 0, %v196
    %v199 = vsub.s32 32, %v198
    %v200 = vshll.u32 %v191, %v198
    %v201 = vshrl.u32 %v183, %v199
    %v202 = vor.u32 %v200, %v201
    %v203 = vsub.s32 4294967266, %v198
    %v204 = vadd.s32 %v203, 127
    %v205 = vshll.u32 %v204, 23
    %v206 = vor.u32 4788187, %v205
    %v207 = vand.u32 2147483647, %v206
    %v209 = vcvt.s32.f32 %v202
    %v210 = vmul.f32 %v209, %v207
    %v211 = vxor.u32 %v210, 2147483648
    %v212 = vsel %vm129, %v211, %v210
    %v213 = vsub.s32 4, %v189
    %v214 = vsel %vm129, %v213, %v189
    %v215 = vsel %vm128, %v22, %v212
    %v216 = vsel %vm128, 0, %v214
    %v217 = vcosq.f32.pop %v215
    %v218 = vsinq.f32.pop %v215
    %vm219 = vweird.f32 %v22
    %v220 = vand.u32 %v216, 3
    %vm221 = vcmp.lt.s32.totalorder %v220, 2
    %vm222 = vcmp.eq.s32.totalorder %v220, 0
    %v223 = vxor.u32 %v218, 2147483648
    %v224 = vsel %vm222, %v217, %v223
    %vm225 = vcmp.eq.s32.totalorder %v220, 2
    %v226 = vxor.u32 %v217, 2147483648
    %v227 = vsel %vm225, %v226, %v218
    %v228 = vsel %vm221, %v224, %v227
    %v229 = vsel %vm219, nan, %v228
    %vm230 = vcmask 257024
    %231 = vst.msk [vmem:[#allocation5] sm:$0xf] %vm230, %v126
    %232 = vst.msk [vmem:[#allocation5 + $0x10] sm:$0xf] %vm230, %v229
    %v233 = vmul.f32 %v126, 2.0
    %v234 = vmul.f32 %v233, %v229
    %v235 = vsub.f32 %v229, %v126
    %v236 = vadd.f32 %v229, %v126
    %v237 = vmul.f32 %v235, %v236
    %238 = vst.msk [vmem:[#allocation5 + $0x4] sm:$0xf] %vm230, %v234
    %239 = vst.msk [vmem:[#allocation5 + $0x14] sm:$0xf] %vm230, %v237
    %v240 = vmul.f32 %v234, 2.0
    %v241 = vmul.f32 %v240, %v237
    %v242 = vsub.f32 %v237, %v234
    %v243 = vadd.f32 %v237, %v234
    %v244 = vmul.f32 %v242, %v243
    %245 = vst.msk [vmem:[#allocation5 + $0x8] sm:$0xf] %vm230, %v241
    %246 = vst.msk [vmem:[#allocation5 + $0x18] sm:$0xf] %vm230, %v244
    %v247 = vmul.f32 %v241, 2.0
    %v248 = vmul.f32 %v247, %v244
    %v249 = vsub.f32 %v244, %v241
    %v250 = vadd.f32 %v244, %v241
    %v251 = vmul.f32 %v249, %v250
    %252 = vst.msk [vmem:[#allocation5 + $0xc] sm:$0xf] %vm230, %v248
    %253 = vst.msk [vmem:[#allocation5 + $0x1c] sm:$0xf] %vm230, %v251
    // Predicated region
    $region10: #{tpu_custom_call.1} parent=1 // pred_check
      _
    $region11: #{tpu_custom_call.1} parent=1 // pred_check_branch
      %255 = sbr.rel (0) target = $region13
    $region12: #{tpu_custom_call.1} parent=1 // pred_region
      %s257 = ssub.s32 512, 512
      %258 = vsyncadd [#allocation4], %s257
      %s259 = sshll.u32 [#allocation5], 4
      %s260 = int_to_ptr.vmem [resolvable:$true] %s259
      %265 = dma.vmem_to_hbm [thread:$0]  %s260, 512, %s1, [#allocation4], 128, 128, 8
    $region13: #{tpu_custom_call.1} parent=1 // pred_fallthru
      _
    // Predicated region
    $region14: #{tpu_custom_call.1} parent=1 // pred_check
      _
    $region15: #{tpu_custom_call.1} parent=1 // pred_check_branch
      %267 = sbr.rel (0) target = $region17
    $region16: #{tpu_custom_call.1} parent=1 // pred_region
      %268 = dma.done [#allocation4], 512
    $region17: #{tpu_custom_call.1} parent=1 // pred_fallthru
      _
    %269 = vsyncpa [#allocation3], 1
    %270 = vsyncpa [#allocation4], 1

</llo_original>
